<compile_context>
chip_gen: v6e
topology: v6e:2x2x1
jax: 0.10.0
libtpu: 0.0.40
codegen_flags: <defaults>
</compile_context>

<pallas_src>
import functools

import jax
import jax.numpy as jnp
from jax.experimental import pallas as pl
from jax.experimental.pallas import tpu as pltpu

WEIGHT_NAMES = ("we1", "be1", "we2", "be2",
                "wtd1h", "wtd1x", "btd1",
                "wt2", "bt2", "wd2", "bd2", "wd3", "bd3")

LANE = 128


def _cdiv(a, b):
    return (a + b - 1) // b


def _round_up(x, m):
    return _cdiv(x, m) * m


def _choose_tile_b(N, max_tile=512):
    """Batch-tile size: multiple of 8 sublanes, <= max_tile, minimal padding.

    For large N we force >= 2 tiles so the 'parallel' batch axis can be sharded
    across both TensorCores on v7x (one extra ~0.35us grid step on 1-TC chips).
    """
    tiles = _cdiv(N, max_tile)
    if N >= 256:
        tiles = max(tiles, 2)
    return _round_up(_cdiv(N, tiles), 8)


# ---------------------------------------------------------------------------
# Kernel
# ---------------------------------------------------------------------------
def _rssm_kernel(O, S, H, out_pad, cdt,
                 obs_act_ref,
                 we1_ref, be1_ref, we2_ref, be2_ref,
                 wtd1h_ref, wtd1x_ref, btd1_ref,
                 wt2_ref, bt2_ref, wd2_ref, bd2_ref, wd3_ref, bd3_ref,
                 out_ref):
    """Full RSSM network on one batch tile; one lane-dense packed output store."""
    f32 = jnp.float32
    obs_act = obs_act_ref[...]                                       # (tB, O+1) cdt

    # encoder: [obs, act] -> Linear -> ReLU -> Linear
    z = jnp.dot(obs_act, we1_ref[...], preferred_element_type=f32) + be1_ref[...]
    z = jnp.maximum(z, 0.0).astype(cdt)
    h = jnp.dot(z, we2_ref[...], preferred_element_type=f32) + be2_ref[...]
    hc = h.astype(cdt)

    # fused first layers of transition + decoder over [h, obs, act] -> (tB, 2H)
    # (weights pre-split by input stream so no in-kernel concat of [h | obs_act])
    td = (jnp.dot(hc, wtd1h_ref[...], preferred_element_type=f32)
          + jnp.dot(obs_act, wtd1x_ref[...], preferred_element_type=f32)
          + btd1_ref[...])
    td = jnp.maximum(td, 0.0).astype(cdt)

    # separate second layers (no block-diagonal zero weights)
    next_state = (jnp.dot(td[:, :H], wt2_ref[...], preferred_element_type=f32)
                  + bt2_ref[...])
    d2 = jnp.maximum(
        jnp.dot(td[:, H:], wd2_ref[...], preferred_element_type=f32) + bd2_ref[...],
        0.0).astype(cdt)
    obs_pred = jnp.dot(d2, wd3_ref[...], preferred_element_type=f32) + bd3_ref[...]

    # single lane-dense (multiple-of-128-lane) full-block store of packed outputs
    parts = [obs_pred, next_state]
    pad_w = out_pad - (O + S)
    if pad_w:
        parts.append(jnp.zeros((obs_pred.shape[0], pad_w), f32))
    out_ref[...] = jnp.concatenate(parts, axis=-1)


# ---------------------------------------------------------------------------
# Parameter preparation (fusion done once, outside the kernel)
# ---------------------------------------------------------------------------
def fuse_params(params, compute_dtype=jnp.float32):
    """Builds the fused weight layout used by the kernel from per-layer params."""
    O = params["dw3"].shape[1]
    S = params["ew2"].shape[0]
    H = params["tw1"].shape[1]
    f32 = jnp.float32
    cdt = compute_dtype

    tw1 = params["tw1"].astype(f32)          # (S+1, H)    rows: [h | act]
    dw1 = params["dw1"].astype(f32)          # (S+O+1, H)  rows: [h | obs | act]

    # Fused first layers of transition (cols :H) + decoder (cols H:), split by
    # input stream.  Keep this fusion only while N = 2H fits one MXU pass
    # (<= 256 on v6e/v7x, <= 128 on v5e); split it for larger H.
    wtd1h = jnp.concatenate([tw1[:S], dw1[:S]], axis=1)              # (S, 2H)
    wtd1x = jnp.zeros((O + 1, 2 * H), f32)
    wtd1x = wtd1x.at[O, :H].set(tw1[S])                              # act -> transition
    wtd1x = wtd1x.at[:, H:].set(dw1[S:])                             # [obs, act] -> decoder
    btd1 = jnp.concatenate([params["tb1"], params["db1"]], axis=1)   # (1, 2H)

    return dict(
        we1=params["ew1"].astype(cdt), be1=params["eb1"].astype(f32),
        we2=params["ew2"].astype(cdt), be2=params["eb2"].astype(f32),
        wtd1h=wtd1h.astype(cdt), wtd1x=wtd1x.astype(cdt), btd1=btd1.astype(f32),
        wt2=params["tw2"].astype(cdt), bt2=params["tb2"].astype(f32),
        wd2=params["dw2"].astype(cdt), bd2=params["db2"].astype(f32),
        wd3=params["dw3"].astype(cdt), bd3=params["db3"].astype(f32),
        dims=(O, S, H), compute_dtype=cdt,
    )


# ---------------------------------------------------------------------------
# Wrappers
# ---------------------------------------------------------------------------
def _rssm_apply(obs_act, fused, max_tile_b):
    """Runs the RSSM network on a flat (N, O+1) [obs, act] slab via pallas_call."""
    O, S, H = fused["dims"]
    cdt = fused["compute_dtype"]
    N = obs_act.shape[0]
    out_pad = _round_up(O + S, LANE)          # lane-dense packed output width

    tile_b = _choose_tile_b(N, max_tile_b)
    Np = _round_up(N, tile_b)
    if Np != N:
        obs_act = jnp.pad(obs_act, ((0, Np - N), (0, 0)))

    weights = tuple(fused[n] for n in WEIGHT_NAMES)
    in_specs = (
        [pl.BlockSpec((tile_b, O + 1), lambda i: (i, 0))]
        # constant block index -> weights fetched once, VMEM-resident across grid
        + [pl.BlockSpec(w.shape, lambda i: (0, 0)) for w in weights]
    )
    out_spec = pl.BlockSpec((tile_b, out_pad), lambda i: (i, 0))

    kernel = functools.partial(_rssm_kernel, O, S, H, out_pad, cdt)
    packed = pl.pallas_call(
        kernel,
        grid=(Np // tile_b,),
        in_specs=in_specs,
        out_specs=out_spec,
        out_shape=jax.ShapeDtypeStruct((Np, out_pad), jnp.float32),
        compiler_params=pltpu.CompilerParams(
            dimension_semantics=("parallel",),
            vmem_limit_bytes=32 * 1024 * 1024),
    )(obs_act, *weights)

    obs_pred = packed[:N, :O]
    next_state = packed[:N, O:O + S]
    return obs_pred, next_state


def rssm_forward(obs, action, state, fused, *, max_tile_b=512):
    """Single-step RSSM forward (matches the PyTorch module's forward)."""
    O, S, H = fused["dims"]
    cdt = fused["compute_dtype"]
    B = obs.shape[0]

    obs_act = jnp.concatenate(
        [obs.astype(jnp.float32), action.reshape(B, 1).astype(jnp.float32)],
        axis=1).astype(cdt)
    obs_pred, next_state = _rssm_apply(obs_act, fused, max_tile_b)

    # KL(N(state,1) || N(0,1)) = 0.5*state^2 — trivial elementwise op kept
    # outside the kernel (removes one input + one output DMA stream per step).
    kl = 0.5 * jnp.square(state.astype(jnp.float32))
    # TODO(synk): torch.distributions.Normal likelihood object has no Pallas
    # equivalent; we return its parameters (obs_pred, scale=0.1) instead.
    return obs_pred, next_state, kl, 0.1


def rssm_rollout(obs_seq, action_seq, state0, fused, *, max_tile_b=512):
    """T-step rollout with state_{t+1} = next_state_t.

    next_state / obs_pred depend only on (obs_t, act_t) and KL only on state_t,
    so the whole rollout is flattened into one (T*B)-row pallas_call (weights
    DMA'd once, large lane-dense tiles); per-step KL is reconstructed from
    [state0; next_state_seq[:-1]] in the wrapper.
    """
    O, S, H = fused["dims"]
    cdt = fused["compute_dtype"]
    T, B, _ = obs_seq.shape

    obs_act = jnp.concatenate(
        [obs_seq.astype(jnp.float32),
         action_seq.reshape(T, B, 1).astype(jnp.float32)],
        axis=-1).astype(cdt).reshape(T * B, O + 1)
    obs_pred, next_state = _rssm_apply(obs_act, fused, max_tile_b)

    obs_pred_seq = obs_pred.reshape(T, B, O)
    next_state_seq = next_state.reshape(T, B, S)
    states = jnp.concatenate(
        [state0.astype(jnp.float32)[None], next_state_seq[:-1]], axis=0)
    kl_seq = 0.5 * jnp.square(states)
    return obs_pred_seq, next_state_seq, kl_seq, 0.1


# ---------------------------------------------------------------------------
# Init + pure-JAX reference (mirrors the PyTorch module)
# ---------------------------------------------------------------------------
def init_params(key, obs_dim, state_dim, hidden_dim):
    """Deterministic PyTorch-Linear-style init; weights stored as (in, out)."""
    def linear(k, fan_in, fan_out):
        k1, k2 = jax.random.split(k)
        bound = 1.0 / jnp.sqrt(fan_in)
        w = jax.random.uniform(k1, (fan_in, fan_out), jnp.float32, -bound, bound)
        b = jax.random.uniform(k2, (1, fan_out), jnp.float32, -bound, bound)
        return w, b

    keys = jax.random.split(key, 7)
    ew1, eb1 = linear(keys[0], obs_dim + 1, state_dim)
    ew2, eb2 = linear(keys[1], state_dim, state_dim)
    tw1, tb1 = linear(keys[2], state_dim + 1, hidden_dim)
    tw2, tb2 = linear(keys[3], hidden_dim, state_dim)
    dw1, db1 = linear(keys[4], state_dim + obs_dim + 1, hidden_dim)
    dw2, db2 = linear(keys[5], hidden_dim, state_dim)
    dw3, db3 = linear(keys[6], state_dim, obs_dim)
    return dict(ew1=ew1, eb1=eb1, ew2=ew2, eb2=eb2,
                tw1=tw1, tb1=tb1, tw2=tw2, tb2=tb2,
                dw1=dw1, db1=db1, dw2=dw2, db2=db2, dw3=dw3, db3=db3)


def _reference_forward(obs, action, state, params):
    """Pure-JAX reference identical to the PyTorch forward (unfused params)."""
    act = action.reshape(-1, 1)
    x = jnp.concatenate([obs, act], axis=-1)
    h = jnp.maximum(x @ params["ew1"] + params["eb1"], 0.0) @ params["ew2"] + params["eb2"]
    x2 = jnp.concatenate([h, act], axis=-1)
    next_state = (jnp.maximum(x2 @ params["tw1"] + params["tb1"], 0.0)
                  @ params["tw2"] + params["tb2"])
    y = jnp.concatenate([h, obs, act], axis=-1)
    d1 = jnp.maximum(y @ params["dw1"] + params["db1"], 0.0)
    d2 = jnp.maximum(d1 @ params["dw2"] + params["db2"], 0.0)
    obs_pred = d2 @ params["dw3"] + params["db3"]
    kl = 0.5 * state * state
    return obs_pred, next_state, kl


if __name__ == "__main__":
    B, OBS_DIM, STATE_DIM, HIDDEN_DIM, T = 8, 16, 32, 32, 6

    key = jax.random.PRNGKey(0)
    k_obs, k_act, k_state, k_params, k_oseq, k_aseq = jax.random.split(key, 6)

    obs = jax.random.normal(k_obs, (B, OBS_DIM), jnp.float32)
    action = jax.random.normal(k_act, (B,), jnp.float32)   # scalar action per sample
    state = jax.random.normal(k_state, (B, STATE_DIM), jnp.float32)
    params = init_params(k_params, OBS_DIM, STATE_DIM, HIDDEN_DIM)

    # --- single-step forward, f32 compute ---
    fused_f32 = fuse_params(params, jnp.float32)
    obs_pred, next_state, kl_div, lik_scale = rssm_forward(obs, action, state, fused_f32)
    jax.block_until_ready((obs_pred, next_state, kl_div))

    r_obs_pred, r_next_state, r_kl = _reference_forward(obs, action, state, params)
    assert obs_pred.shape == (B, OBS_DIM)
    assert next_state.shape == (B, STATE_DIM)
    assert kl_div.shape == (B, STATE_DIM)
    assert jnp.allclose(obs_pred, r_obs_pred, atol=1e-4, rtol=1e-4)
    assert jnp.allclose(next_state, r_next_state, atol=1e-4, rtol=1e-4)
    assert jnp.allclose(kl_div, r_kl, atol=1e-6)

    # --- single-step forward, bf16 MXU operands (halves weight/activation DMA) ---
    fused_bf16 = fuse_params(params, jnp.bfloat16)
    obs_pred_b, next_state_b, kl_b, _ = rssm_forward(obs, action, state, fused_bf16)
    jax.block_until_ready((obs_pred_b, next_state_b, kl_b))
    assert jnp.allclose(obs_pred_b, r_obs_pred, atol=0.1, rtol=0.1)
    assert jnp.allclose(next_state_b, r_next_state, atol=0.1, rtol=0.1)
    assert jnp.allclose(kl_b, r_kl, atol=1e-6)

    # --- multi-step rollout (single pallas_call over the flattened T*B rows) ---
    obs_seq = jax.random.normal(k_oseq, (T, B, OBS_DIM), jnp.float32)
    act_seq = jax.random.normal(k_aseq, (T, B), jnp.float32)
    op_seq, ns_seq, kl_seq, _ = rssm_rollout(obs_seq, act_seq, state, fused_f32)
    jax.block_until_ready((op_seq, ns_seq, kl_seq))

    st = state
    ref_op, ref_ns, ref_kl = [], [], []
    for t in range(T):
        o_p, n_s, k_l = _reference_forward(obs_seq[t], act_seq[t], st, params)
        ref_op.append(o_p); ref_ns.append(n_s); ref_kl.append(k_l)
        st = n_s
    ref_op = jnp.stack(ref_op); ref_ns = jnp.stack(ref_ns); ref_kl = jnp.stack(ref_kl)

    assert op_seq.shape == (T, B, OBS_DIM)
    assert ns_seq.shape == (T, B, STATE_DIM)
    assert kl_seq.shape == (T, B, STATE_DIM)
    assert jnp.allclose(op_seq, ref_op, atol=1e-4, rtol=1e-4)
    assert jnp.allclose(ns_seq, ref_ns, atol=1e-4, rtol=1e-4)
    assert jnp.allclose(kl_seq, ref_kl, atol=1e-4, rtol=1e-4)

    print("KERNEL_OK")
</pallas_src>

<mosaic_0001>
module attributes {stable_mosaic.version = 11 : i64} {
  func.func @_rssm_kernel(%arg0: i32, %arg1: memref<8x17xf32, #tpu.memory_space<vmem>>, %arg2: memref<17x32xf32, #tpu.memory_space<vmem>>, %arg3: memref<1x32xf32, #tpu.memory_space<vmem>>, %arg4: memref<32x32xf32, #tpu.memory_space<vmem>>, %arg5: memref<1x32xf32, #tpu.memory_space<vmem>>, %arg6: memref<32x64xf32, #tpu.memory_space<vmem>>, %arg7: memref<17x64xf32, #tpu.memory_space<vmem>>, %arg8: memref<1x64xf32, #tpu.memory_space<vmem>>, %arg9: memref<32x32xf32, #tpu.memory_space<vmem>>, %arg10: memref<1x32xf32, #tpu.memory_space<vmem>>, %arg11: memref<32x32xf32, #tpu.memory_space<vmem>>, %arg12: memref<1x32xf32, #tpu.memory_space<vmem>>, %arg13: memref<32x16xf32, #tpu.memory_space<vmem>>, %arg14: memref<1x16xf32, #tpu.memory_space<vmem>>, %arg15: memref<8x128xf32, #tpu.memory_space<vmem>>) attributes {dimension_semantics = [#tpu.dimension_semantics<parallel>], iteration_bounds = array<i64: 1>, scalar_prefetch = 0 : i64, scratch_operands = 0 : i64, tpu.core_type = #tpu.core_type<tc>, window_params = [{transform_indices = @transform_0, window_bounds = array<i64: 8, 17>}, {pipeline_mode = #tpu.pipeline_mode<synchronous>, transform_indices = @transform_1, window_bounds = array<i64: 17, 32>}, {pipeline_mode = #tpu.pipeline_mode<synchronous>, transform_indices = @transform_2, window_bounds = array<i64: 1, 32>}, {pipeline_mode = #tpu.pipeline_mode<synchronous>, transform_indices = @transform_3, window_bounds = array<i64: 32, 32>}, {pipeline_mode = #tpu.pipeline_mode<synchronous>, transform_indices = @transform_4, window_bounds = array<i64: 1, 32>}, {pipeline_mode = #tpu.pipeline_mode<synchronous>, transform_indices = @transform_5, window_bounds = array<i64: 32, 64>}, {pipeline_mode = #tpu.pipeline_mode<synchronous>, transform_indices = @transform_6, window_bounds = array<i64: 17, 64>}, {pipeline_mode = #tpu.pipeline_mode<synchronous>, transform_indices = @transform_7, window_bounds = array<i64: 1, 64>}, {pipeline_mode = #tpu.pipeline_mode<synchronous>, transform_indices = @transform_8, window_bounds = array<i64: 32, 32>}, {pipeline_mode = #tpu.pipeline_mode<synchronous>, transform_indices = @transform_9, window_bounds = array<i64: 1, 32>}, {pipeline_mode = #tpu.pipeline_mode<synchronous>, transform_indices = @transform_10, window_bounds = array<i64: 32, 32>}, {pipeline_mode = #tpu.pipeline_mode<synchronous>, transform_indices = @transform_11, window_bounds = array<i64: 1, 32>}, {pipeline_mode = #tpu.pipeline_mode<synchronous>, transform_indices = @transform_12, window_bounds = array<i64: 32, 16>}, {pipeline_mode = #tpu.pipeline_mode<synchronous>, transform_indices = @transform_13, window_bounds = array<i64: 1, 16>}, {transform_indices = @transform_14, window_bounds = array<i64: 8, 128>}]} {
    %c0 = arith.constant 0 : index
    %c0_0 = arith.constant 0 : index
    %0 = vector.load %arg1[%c0, %c0_0] : memref<8x17xf32, #tpu.memory_space<vmem>>, vector<8x17xf32>
    %c0_1 = arith.constant 0 : index
    %c0_2 = arith.constant 0 : index
    %1 = vector.load %arg2[%c0_1, %c0_2] : memref<17x32xf32, #tpu.memory_space<vmem>>, vector<17x32xf32>
    %cst = arith.constant dense<0.000000e+00> : vector<8x32xf32>
    %2 = tpu.matmul %0, %1, %cst {dimension_numbers = #tpu.dot_dimension_numbers<[1], [0], [0], [1], [0, 0, 1, 1], [], []>} : vector<8x17xf32>, vector<17x32xf32>, vector<8x32xf32> -> vector<8x32xf32>
    %c0_3 = arith.constant 0 : index
    %c0_4 = arith.constant 0 : index
    %3 = vector.load %arg3[%c0_3, %c0_4] : memref<1x32xf32, #tpu.memory_space<vmem>>, vector<1x32xf32>
    %4 = vector.broadcast %3 : vector<1x32xf32> to vector<8x32xf32>
    %5 = arith.addf %2, %4 : vector<8x32xf32>
    %cst_5 = arith.constant 0.000000e+00 : f32
    %6 = vector.broadcast %cst_5 : f32 to vector<8x32xf32>
    %7 = arith.maximumf %5, %6 : vector<8x32xf32>
    %c0_6 = arith.constant 0 : index
    %c0_7 = arith.constant 0 : index
    %8 = vector.load %arg4[%c0_6, %c0_7] : memref<32x32xf32, #tpu.memory_space<vmem>>, vector<32x32xf32>
    %cst_8 = arith.constant dense<0.000000e+00> : vector<8x32xf32>
    %9 = tpu.matmul %7, %8, %cst_8 {dimension_numbers = #tpu.dot_dimension_numbers<[1], [0], [0], [1], [0, 0, 1, 1], [], []>} : vector<8x32xf32>, vector<32x32xf32>, vector<8x32xf32> -> vector<8x32xf32>
    %c0_9 = arith.constant 0 : index
    %c0_10 = arith.constant 0 : index
    %10 = vector.load %arg5[%c0_9, %c0_10] : memref<1x32xf32, #tpu.memory_space<vmem>>, vector<1x32xf32>
    %11 = vector.broadcast %10 : vector<1x32xf32> to vector<8x32xf32>
    %12 = arith.addf %9, %11 : vector<8x32xf32>
    %c0_11 = arith.constant 0 : index
    %c0_12 = arith.constant 0 : index
    %13 = vector.load %arg6[%c0_11, %c0_12] : memref<32x64xf32, #tpu.memory_space<vmem>>, vector<32x64xf32>
    %cst_13 = arith.constant dense<0.000000e+00> : vector<8x64xf32>
    %14 = tpu.matmul %12, %13, %cst_13 {dimension_numbers = #tpu.dot_dimension_numbers<[1], [0], [0], [1], [0, 0, 1, 1], [], []>} : vector<8x32xf32>, vector<32x64xf32>, vector<8x64xf32> -> vector<8x64xf32>
    %c0_14 = arith.constant 0 : index
    %c0_15 = arith.constant 0 : index
    %15 = vector.load %arg7[%c0_14, %c0_15] : memref<17x64xf32, #tpu.memory_space<vmem>>, vector<17x64xf32>
    %cst_16 = arith.constant dense<0.000000e+00> : vector<8x64xf32>
    %16 = tpu.matmul %0, %15, %cst_16 {dimension_numbers = #tpu.dot_dimension_numbers<[1], [0], [0], [1], [0, 0, 1, 1], [], []>} : vector<8x17xf32>, vector<17x64xf32>, vector<8x64xf32> -> vector<8x64xf32>
    %17 = arith.addf %14, %16 : vector<8x64xf32>
    %c0_17 = arith.constant 0 : index
    %c0_18 = arith.constant 0 : index
    %18 = vector.load %arg8[%c0_17, %c0_18] : memref<1x64xf32, #tpu.memory_space<vmem>>, vector<1x64xf32>
    %19 = vector.broadcast %18 : vector<1x64xf32> to vector<8x64xf32>
    %20 = arith.addf %17, %19 : vector<8x64xf32>
    %cst_19 = arith.constant 0.000000e+00 : f32
    %21 = vector.broadcast %cst_19 : f32 to vector<8x64xf32>
    %22 = arith.maximumf %20, %21 : vector<8x64xf32>
    %23 = vector.extract_strided_slice %22 {offsets = [0, 0], sizes = [8, 32], strides = [1, 1]} : vector<8x64xf32> to vector<8x32xf32>
    %c0_20 = arith.constant 0 : index
    %c0_21 = arith.constant 0 : index
    %24 = vector.load %arg9[%c0_20, %c0_21] : memref<32x32xf32, #tpu.memory_space<vmem>>, vector<32x32xf32>
    %cst_22 = arith.constant dense<0.000000e+00> : vector<8x32xf32>
    %25 = tpu.matmul %23, %24, %cst_22 {dimension_numbers = #tpu.dot_dimension_numbers<[1], [0], [0], [1], [0, 0, 1, 1], [], []>} : vector<8x32xf32>, vector<32x32xf32>, vector<8x32xf32> -> vector<8x32xf32>
    %c0_23 = arith.constant 0 : index
    %c0_24 = arith.constant 0 : index
    %26 = vector.load %arg10[%c0_23, %c0_24] : memref<1x32xf32, #tpu.memory_space<vmem>>, vector<1x32xf32>
    %27 = vector.broadcast %26 : vector<1x32xf32> to vector<8x32xf32>
    %28 = arith.addf %25, %27 : vector<8x32xf32>
    %29 = vector.extract_strided_slice %22 {offsets = [0, 32], sizes = [8, 32], strides = [1, 1]} : vector<8x64xf32> to vector<8x32xf32>
    %c0_25 = arith.constant 0 : index
    %c0_26 = arith.constant 0 : index
    %30 = vector.load %arg11[%c0_25, %c0_26] : memref<32x32xf32, #tpu.memory_space<vmem>>, vector<32x32xf32>
    %cst_27 = arith.constant dense<0.000000e+00> : vector<8x32xf32>
    %31 = tpu.matmul %29, %30, %cst_27 {dimension_numbers = #tpu.dot_dimension_numbers<[1], [0], [0], [1], [0, 0, 1, 1], [], []>} : vector<8x32xf32>, vector<32x32xf32>, vector<8x32xf32> -> vector<8x32xf32>
    %c0_28 = arith.constant 0 : index
    %c0_29 = arith.constant 0 : index
    %32 = vector.load %arg12[%c0_28, %c0_29] : memref<1x32xf32, #tpu.memory_space<vmem>>, vector<1x32xf32>
    %33 = vector.broadcast %32 : vector<1x32xf32> to vector<8x32xf32>
    %34 = arith.addf %31, %33 : vector<8x32xf32>
    %cst_30 = arith.constant 0.000000e+00 : f32
    %35 = vector.broadcast %cst_30 : f32 to vector<8x32xf32>
    %36 = arith.maximumf %34, %35 : vector<8x32xf32>
    %c0_31 = arith.constant 0 : index
    %c0_32 = arith.constant 0 : index
    %37 = vector.load %arg13[%c0_31, %c0_32] : memref<32x16xf32, #tpu.memory_space<vmem>>, vector<32x16xf32>
    %cst_33 = arith.constant dense<0.000000e+00> : vector<8x16xf32>
    %38 = tpu.matmul %36, %37, %cst_33 {dimension_numbers = #tpu.dot_dimension_numbers<[1], [0], [0], [1], [0, 0, 1, 1], [], []>} : vector<8x32xf32>, vector<32x16xf32>, vector<8x16xf32> -> vector<8x16xf32>
    %c0_34 = arith.constant 0 : index
    %c0_35 = arith.constant 0 : index
    %39 = vector.load %arg14[%c0_34, %c0_35] : memref<1x16xf32, #tpu.memory_space<vmem>>, vector<1x16xf32>
    %40 = vector.broadcast %39 : vector<1x16xf32> to vector<8x16xf32>
    %41 = arith.addf %38, %40 : vector<8x16xf32>
    %cst_36 = arith.constant 0.000000e+00 : f32
    %42 = vector.broadcast %cst_36 : f32 to vector<8x80xf32>
    %43 = tpu.concatenate %41, %28, %42 in 1 : vector<8x16xf32>, vector<8x32xf32>, vector<8x80xf32> -> vector<8x128xf32>
    %c0_37 = arith.constant 0 : index
    %c0_38 = arith.constant 0 : index
    %44 = vector.load %arg15[%c0_37, %c0_38] : memref<8x128xf32, #tpu.memory_space<vmem>>, vector<8x128xf32>
    tpu.vector_store %arg15[%c0_37, %c0_38], %43 {strides = array<i32>} : memref<8x128xf32, #tpu.memory_space<vmem>>, vector<8x128xf32>,
    return
  }
  func.func @transform_0(%arg0: i32) -> (i32, i32) {
    %c0_i32 = arith.constant 0 : i32
    %c0_i32_0 = arith.constant 0 : i32
    return %arg0, %c0_i32 : i32, i32
  }
  func.func @transform_1(%arg0: i32) -> (i32, i32) {
    %c0_i32 = arith.constant 0 : i32
    %c0_i32_0 = arith.constant 0 : i32
    %c0_i32_1 = arith.constant 0 : i32
    return %c0_i32, %c0_i32_0 : i32, i32
  }
  func.func @transform_2(%arg0: i32) -> (i32, i32) {
    %c0_i32 = arith.constant 0 : i32
    %c0_i32_0 = arith.constant 0 : i32
    %c0_i32_1 = arith.constant 0 : i32
    return %c0_i32, %c0_i32_0 : i32, i32
  }
  func.func @transform_3(%arg0: i32) -> (i32, i32) {
    %c0_i32 = arith.constant 0 : i32
    %c0_i32_0 = arith.constant 0 : i32
    %c0_i32_1 = arith.constant 0 : i32
    return %c0_i32, %c0_i32_0 : i32, i32
  }
  func.func @transform_4(%arg0: i32) -> (i32, i32) {
    %c0_i32 = arith.constant 0 : i32
    %c0_i32_0 = arith.constant 0 : i32
    %c0_i32_1 = arith.constant 0 : i32
    return %c0_i32, %c0_i32_0 : i32, i32
  }
  func.func @transform_5(%arg0: i32) -> (i32, i32) {
    %c0_i32 = arith.constant 0 : i32
    %c0_i32_0 = arith.constant 0 : i32
    %c0_i32_1 = arith.constant 0 : i32
    return %c0_i32, %c0_i32_0 : i32, i32
  }
  func.func @transform_6(%arg0: i32) -> (i32, i32) {
    %c0_i32 = arith.constant 0 : i32
    %c0_i32_0 = arith.constant 0 : i32
    %c0_i32_1 = arith.constant 0 : i32
    return %c0_i32, %c0_i32_0 : i32, i32
  }
  func.func @transform_7(%arg0: i32) -> (i32, i32) {
    %c0_i32 = arith.constant 0 : i32
    %c0_i32_0 = arith.constant 0 : i32
    %c0_i32_1 = arith.constant 0 : i32
    return %c0_i32, %c0_i32_0 : i32, i32
  }
  func.func @transform_8(%arg0: i32) -> (i32, i32) {
    %c0_i32 = arith.constant 0 : i32
    %c0_i32_0 = arith.constant 0 : i32
    %c0_i32_1 = arith.constant 0 : i32
    return %c0_i32, %c0_i32_0 : i32, i32
  }
  func.func @transform_9(%arg0: i32) -> (i32, i32) {
    %c0_i32 = arith.constant 0 : i32
    %c0_i32_0 = arith.constant 0 : i32
    %c0_i32_1 = arith.constant 0 : i32
    return %c0_i32, %c0_i32_0 : i32, i32
  }
  func.func @transform_10(%arg0: i32) -> (i32, i32) {
    %c0_i32 = arith.constant 0 : i32
    %c0_i32_0 = arith.constant 0 : i32
    %c0_i32_1 = arith.constant 0 : i32
    return %c0_i32, %c0_i32_0 : i32, i32
  }
  func.func @transform_11(%arg0: i32) -> (i32, i32) {
    %c0_i32 = arith.constant 0 : i32
    %c0_i32_0 = arith.constant 0 : i32
    %c0_i32_1 = arith.constant 0 : i32
    return %c0_i32, %c0_i32_0 : i32, i32
  }
  func.func @transform_12(%arg0: i32) -> (i32, i32) {
    %c0_i32 = arith.constant 0 : i32
    %c0_i32_0 = arith.constant 0 : i32
    %c0_i32_1 = arith.constant 0 : i32
    return %c0_i32, %c0_i32_0 : i32, i32
  }
  func.func @transform_13(%arg0: i32) -> (i32, i32) {
    %c0_i32 = arith.constant 0 : i32
    %c0_i32_0 = arith.constant 0 : i32
    %c0_i32_1 = arith.constant 0 : i32
    return %c0_i32, %c0_i32_0 : i32, i32
  }
  func.func @transform_14(%arg0: i32) -> (i32, i32) {
    %c0_i32 = arith.constant 0 : i32
    %c0_i32_0 = arith.constant 0 : i32
    return %arg0, %c0_i32 : i32, i32
  }
}

</mosaic_0001>

<llo_original>
// kernel: tpu_custom_call.1
$region0: #{tpu_custom_call.1}
  #allocation0 [shape = 'u32[]', space=smem, size = 0x4, offset = 0x4, fixed_abs, tag = 'smem constant byte address 0x4 - core index']
  #allocation1 [shape = 'u32[144,128]{1,0:T(1,128)}', space=vmem, size = 0x12000, scoped, tag = 'internal scratch']
  %s0 = inlined_call_operand.hbm [shape: f32[8,17], index: 0, kind: input, shape index: {}]
  %s1 = inlined_call_operand.hbm [shape: f32[17,32], index: 1, kind: input, shape index: {}]
  %s2 = inlined_call_operand.hbm [shape: f32[1,32], index: 2, kind: input, shape index: {}]
  %s3 = inlined_call_operand.vmem [shape: f32[32,32], index: 3, kind: input, shape index: {}]
  %s4 = inlined_call_operand.hbm [shape: f32[1,32], index: 4, kind: input, shape index: {}]
  %s5 = inlined_call_operand.hbm [shape: f32[32,64], index: 5, kind: input, shape index: {}]
  %s6 = inlined_call_operand.hbm [shape: f32[17,64], index: 6, kind: input, shape index: {}]
  %s7 = inlined_call_operand.hbm [shape: f32[1,64], index: 7, kind: input, shape index: {}]
  %s8 = inlined_call_operand.hbm [shape: f32[32,32], index: 8, kind: input, shape index: {}]
  %s9 = inlined_call_operand.hbm [shape: f32[1,32], index: 9, kind: input, shape index: {}]
  %s10 = inlined_call_operand.vmem [shape: f32[32,32], index: 10, kind: input, shape index: {}]
  %s11 = inlined_call_operand.vmem [shape: f32[1,32], index: 11, kind: input, shape index: {}]
  %s12 = inlined_call_operand.vmem [shape: f32[32,16], index: 12, kind: input, shape index: {}]
  %s13 = inlined_call_operand.vmem [shape: f32[1,16], index: 13, kind: input, shape index: {}]
  %s14 = inlined_call_operand.hbm [shape: f32[8,128], index: 14, kind: output, shape index: {}]
  %s15 = sld [smem:[#allocation0]]
  $region102: #{tpu_custom_call.1} parent=0
    _
  %s17 = ssub.s32 1, %s15
  %s18 = scalar_select 0, %s17, %s15
  $region1: #{tpu_custom_call.1} parent=0
    #allocation2 [shape = 'u8[4096]{0}', space=vmem, size = 0x1000, scoped, tag = 'input window, operand 0, single buffered']
    #allocation3 [shape = 's32[1]{0}', space=sflag, size = 0x4, scoped, tag = 'scoped memory for tpu_custom_call.1']
    #allocation4 [shape = 's32[1]{0}', space=sflag, size = 0x4, scoped, tag = 'scoped memory for tpu_custom_call.1']
    #allocation5 [shape = 'u8[12288]{0}', space=vmem, size = 0x3000, scoped, tag = 'input window, operand 1, single buffered']
    #allocation6 [shape = 's32[1]{0}', space=sflag, size = 0x4, scoped, tag = 'scoped memory for tpu_custom_call.1']
    #allocation7 [shape = 'u8[512]{0}', space=vmem, size = 0x400, scoped, tag = 'input window, operand 2, single buffered']
    #allocation8 [shape = 'u8[512]{0}', space=vmem, size = 0x400, scoped, tag = 'input window, operand 4, single buffered']
    #allocation9 [shape = 's32[1]{0}', space=sflag, size = 0x4, scoped, tag = 'scoped memory for tpu_custom_call.1']
    #allocation10 [shape = 'u8[16384]{0}', space=vmem, size = 0x4000, scoped, tag = 'input window, operand 5, single buffered']
    #allocation11 [shape = 'u8[12288]{0}', space=vmem, size = 0x3000, scoped, tag = 'input window, operand 6, single buffered']
    #allocation12 [shape = 's32[1]{0}', space=sflag, size = 0x4, scoped, tag = 'scoped memory for tpu_custom_call.1']
    #allocation13 [shape = 'u8[512]{0}', space=vmem, size = 0x400, scoped, tag = 'input window, operand 7, single buffered']
    #allocation14 [shape = 'u8[16384]{0}', space=vmem, size = 0x4000, scoped, tag = 'input window, operand 8, single buffered']
    #allocation15 [shape = 's32[1]{0}', space=sflag, size = 0x4, scoped, tag = 'scoped memory for tpu_custom_call.1']
    #allocation16 [shape = 'u8[512]{0}', space=vmem, size = 0x400, scoped, tag = 'input window, operand 9, single buffered']
    #allocation17 [shape = 'u8[4096]{0}', space=vmem, size = 0x1000, scoped, tag = 'output window, operand 0, single buffered']
    %19 = vsyncpa [#allocation3], 0
    %20 = vsyncpa [#allocation6], 0
    %21 = vsyncpa [#allocation9], 0
    %22 = vsyncpa [#allocation12], 0
    %23 = vsyncpa [#allocation15], 0
    %24 = vsyncpa [#allocation4], 0
    // Predicated region
    $region2: #{tpu_custom_call.1} parent=1 // pred_check
      _
    $region3: #{tpu_custom_call.1} parent=1 // pred_check_branch
      %26 = sbr.rel (0) target = $region5
    $region4: #{tpu_custom_call.1} parent=1 // pred_region
      %s28 = ssub.s32 128, 128
      %29 = vsyncadd [#allocation3], %s28
      %s31 = sshll.u32 [#allocation2], 4
      %s32 = int_to_ptr.vmem [resolvable:$true] %s31
      %34 = dma.hbm_to_vmem [thread:$0]  %s0, 128, %s32, [#allocation3]
    $region5: #{tpu_custom_call.1} parent=1 // pred_fallthru
      _
    // Predicated region
    $region6: #{tpu_custom_call.1} parent=1 // pred_check
      _
    $region7: #{tpu_custom_call.1} parent=1 // pred_check_branch
      %36 = sbr.rel (0) target = $region9
    $region8: #{tpu_custom_call.1} parent=1 // pred_region
      %s38 = ssub.s32 384, 384
      %39 = vsyncadd [#allocation6], %s38
      %s40 = sshll.u32 [#allocation5], 4
      %s41 = int_to_ptr.vmem [resolvable:$true] %s40
      %46 = dma.hbm_to_vmem [thread:$0]  %s1, 384, %s41, [#allocation6], 128, 128, 8
    $region9: #{tpu_custom_call.1} parent=1 // pred_fallthru
      _
    // Predicated region
    $region10: #{tpu_custom_call.1} parent=1 // pred_check
      _
    $region11: #{tpu_custom_call.1} parent=1 // pred_check_branch
      %48 = sbr.rel (0) target = $region13
    $region12: #{tpu_custom_call.1} parent=1 // pred_region
      %s50 = ssub.s32 16, 16
      %51 = vsyncadd [#allocation6], %s50
      %s53 = sshll.u32 [#allocation7], 4
      %s54 = int_to_ptr.vmem [resolvable:$true] %s53
      %56 = dma.hbm_to_vmem [thread:$0]  %s2, 16, %s54, [#allocation6]
    $region13: #{tpu_custom_call.1} parent=1 // pred_fallthru
      _
    // Predicated region
    $region14: #{tpu_custom_call.1} parent=1 // pred_check
      _
    $region15: #{tpu_custom_call.1} parent=1 // pred_check_branch
      %58 = sbr.rel (0) target = $region17
    $region16: #{tpu_custom_call.1} parent=1 // pred_region
      _
    $region17: #{tpu_custom_call.1} parent=1 // pred_fallthru
      _
    // Predicated region
    $region18: #{tpu_custom_call.1} parent=1 // pred_check
      _
    $region19: #{tpu_custom_call.1} parent=1 // pred_check_branch
      %60 = sbr.rel (0) target = $region21
    $region20: #{tpu_custom_call.1} parent=1 // pred_region
      %s62 = ssub.s32 16, 16
      %63 = vsyncadd [#allocation9], %s62
      %s65 = sshll.u32 [#allocation8], 4
      %s66 = int_to_ptr.vmem [resolvable:$true] %s65
      %68 = dma.hbm_to_vmem [thread:$0]  %s4, 16, %s66, [#allocation9]
    $region21: #{tpu_custom_call.1} parent=1 // pred_fallthru
      _
    // Predicated region
    $region22: #{tpu_custom_call.1} parent=1 // pred_check
      _
    $region23: #{tpu_custom_call.1} parent=1 // pred_check_branch
      %70 = sbr.rel (0) target = $region25
    $region24: #{tpu_custom_call.1} parent=1 // pred_region
      %s72 = ssub.s32 512, 512
      %73 = vsyncadd [#allocation9], %s72
      %s74 = sshll.u32 [#allocation10], 4
      %s75 = int_to_ptr.vmem [resolvable:$true] %s74
      %80 = dma.hbm_to_vmem [thread:$0]  %s5, 512, %s75, [#allocation9], 128, 128, 8
    $region25: #{tpu_custom_call.1} parent=1 // pred_fallthru
      _
    // Predicated region
    $region26: #{tpu_custom_call.1} parent=1 // pred_check
      _
    $region27: #{tpu_custom_call.1} parent=1 // pred_check_branch
      %82 = sbr.rel (0) target = $region29
    $region28: #{tpu_custom_call.1} parent=1 // pred_region
      %s84 = ssub.s32 384, 384
      %85 = vsyncadd [#allocation12], %s84
      %s86 = sshll.u32 [#allocation11], 4
      %s87 = int_to_ptr.vmem [resolvable:$true] %s86
      %92 = dma.hbm_to_vmem [thread:$0]  %s6, 384, %s87, [#allocation12], 128, 128, 8
    $region29: #{tpu_custom_call.1} parent=1 // pred_fallthru
      _
    // Predicated region
    $region30: #{tpu_custom_call.1} parent=1 // pred_check
      _
    $region31: #{tpu_custom_call.1} parent=1 // pred_check_branch
      %94 = sbr.rel (0) target = $region33
    $region32: #{tpu_custom_call.1} parent=1 // pred_region
      %s96 = ssub.s32 16, 16
      %97 = vsyncadd [#allocation12], %s96
      %s99 = sshll.u32 [#allocation13], 4
      %s100 = int_to_ptr.vmem [resolvable:$true] %s99
      %102 = dma.hbm_to_vmem [thread:$0]  %s7, 16, %s100, [#allocation12]
    $region33: #{tpu_custom_call.1} parent=1 // pred_fallthru
      _
    // Predicated region
    $region34: #{tpu_custom_call.1} parent=1 // pred_check
      _
    $region35: #{tpu_custom_call.1} parent=1 // pred_check_branch
      %104 = sbr.rel (0) target = $region37
    $region36: #{tpu_custom_call.1} parent=1 // pred_region
      %s106 = ssub.s32 512, 512
      %107 = vsyncadd [#allocation15], %s106
      %s108 = sshll.u32 [#allocation14], 4
      %s109 = int_to_ptr.vmem [resolvable:$true] %s108
      %114 = dma.hbm_to_vmem [thread:$0]  %s8, 512, %s109, [#allocation15], 128, 128, 8
    $region37: #{tpu_custom_call.1} parent=1 // pred_fallthru
      _
    // Predicated region
    $region38: #{tpu_custom_call.1} parent=1 // pred_check
      _
    $region39: #{tpu_custom_call.1} parent=1 // pred_check_branch
      %116 = sbr.rel (0) target = $region41
    $region40: #{tpu_custom_call.1} parent=1 // pred_region
      %s118 = ssub.s32 16, 16
      %119 = vsyncadd [#allocation15], %s118
      %s121 = sshll.u32 [#allocation16], 4
      %s122 = int_to_ptr.vmem [resolvable:$true] %s121
      %124 = dma.hbm_to_vmem [thread:$0]  %s9, 16, %s122, [#allocation15]
    $region41: #{tpu_custom_call.1} parent=1 // pred_fallthru
      _
    // Predicated region
    $region42: #{tpu_custom_call.1} parent=1 // pred_check
      _
    $region43: #{tpu_custom_call.1} parent=1 // pred_check_branch
      %126 = sbr.rel (0) target = $region45
    $region44: #{tpu_custom_call.1} parent=1 // pred_region
      _
    $region45: #{tpu_custom_call.1} parent=1 // pred_fallthru
      _
    // Predicated region
    $region46: #{tpu_custom_call.1} parent=1 // pred_check
      _
    $region47: #{tpu_custom_call.1} parent=1 // pred_check_branch
      %128 = sbr.rel (0) target = $region49
    $region48: #{tpu_custom_call.1} parent=1 // pred_region
      _
    $region49: #{tpu_custom_call.1} parent=1 // pred_fallthru
      _
    // Predicated region
    $region50: #{tpu_custom_call.1} parent=1 // pred_check
      _
    $region51: #{tpu_custom_call.1} parent=1 // pred_check_branch
      %130 = sbr.rel (0) target = $region53
    $region52: #{tpu_custom_call.1} parent=1 // pred_region
      _
    $region53: #{tpu_custom_call.1} parent=1 // pred_fallthru
      _
    // Predicated region
    $region54: #{tpu_custom_call.1} parent=1 // pred_check
      _
    $region55: #{tpu_custom_call.1} parent=1 // pred_check_branch
      %132 = sbr.rel (0) target = $region57
    $region56: #{tpu_custom_call.1} parent=1 // pred_region
      _
    $region57: #{tpu_custom_call.1} parent=1 // pred_fallthru
      _
    // Predicated region
    $region58: #{tpu_custom_call.1} parent=1 // pred_check
      _
    $region59: #{tpu_custom_call.1} parent=1 // pred_check_branch
      %134 = sbr.rel (0) target = $region61
    $region60: #{tpu_custom_call.1} parent=1 // pred_region
      %135 = dma.done [#allocation3], 128
    $region61: #{tpu_custom_call.1} parent=1 // pred_fallthru
      _
    // Predicated region
    $region62: #{tpu_custom_call.1} parent=1 // pred_check
      _
    $region63: #{tpu_custom_call.1} parent=1 // pred_check_branch
      %137 = sbr.rel (0) target = $region65
    $region64: #{tpu_custom_call.1} parent=1 // pred_region
      %138 = dma.done [#allocation6], 384
    $region65: #{tpu_custom_call.1} parent=1 // pred_fallthru
      _
    // Predicated region
    $region66: #{tpu_custom_call.1} parent=1 // pred_check
      _
    $region67: #{tpu_custom_call.1} parent=1 // pred_check_branch
      %140 = sbr.rel (0) target = $region69
    $region68: #{tpu_custom_call.1} parent=1 // pred_region
      %141 = dma.done [#allocation6], 16
    $region69: #{tpu_custom_call.1} parent=1 // pred_fallthru
      _
    // Predicated region
    $region70: #{tpu_custom_call.1} parent=1 // pred_check
      _
    $region71: #{tpu_custom_call.1} parent=1 // pred_check_branch
      %143 = sbr.rel (0) target = $region73
    $region72: #{tpu_custom_call.1} parent=1 // pred_region
      %144 = dma.done [#allocation9], 16
    $region73: #{tpu_custom_call.1} parent=1 // pred_fallthru
      _
    // Predicated region
    $region74: #{tpu_custom_call.1} parent=1 // pred_check
      _
    $region75: #{tpu_custom_call.1} parent=1 // pred_check_branch
      %146 = sbr.rel (0) target = $region77
    $region76: #{tpu_custom_call.1} parent=1 // pred_region
      %147 = dma.done [#allocation9], 512
    $region77: #{tpu_custom_call.1} parent=1 // pred_fallthru
      _
    // Predicated region
    $region78: #{tpu_custom_call.1} parent=1 // pred_check
      _
    $region79: #{tpu_custom_call.1} parent=1 // pred_check_branch
      %149 = sbr.rel (0) target = $region81
    $region80: #{tpu_custom_call.1} parent=1 // pred_region
      %150 = dma.done [#allocation12], 384
    $region81: #{tpu_custom_call.1} parent=1 // pred_fallthru
      _
    // Predicated region
    $region82: #{tpu_custom_call.1} parent=1 // pred_check
      _
    $region83: #{tpu_custom_call.1} parent=1 // pred_check_branch
      %152 = sbr.rel (0) target = $region85
    $region84: #{tpu_custom_call.1} parent=1 // pred_region
      %153 = dma.done [#allocation12], 16
    $region85: #{tpu_custom_call.1} parent=1 // pred_fallthru
      _
    // Predicated region
    $region86: #{tpu_custom_call.1} parent=1 // pred_check
      _
    $region87: #{tpu_custom_call.1} parent=1 // pred_check_branch
      %155 = sbr.rel (0) target = $region89
    $region88: #{tpu_custom_call.1} parent=1 // pred_region
      %156 = dma.done [#allocation15], 512
    $region89: #{tpu_custom_call.1} parent=1 // pred_fallthru
      _
    // Predicated region
    $region90: #{tpu_custom_call.1} parent=1 // pred_check
      _
    $region91: #{tpu_custom_call.1} parent=1 // pred_check_branch
      %158 = sbr.rel (0) target = $region93
    $region92: #{tpu_custom_call.1} parent=1 // pred_region
      %159 = dma.done [#allocation15], 16
    $region93: #{tpu_custom_call.1} parent=1 // pred_fallthru
      _
    %v160 = vld [vmem:[#allocation2] sm:$0xff]
    %v161 = vld [vmem:[#allocation5] sm:$0xff]
    %v162 = vld [vmem:[#allocation5 + $0x8] sm:$0xff]
    %v163 = vld [vmem:[#allocation5 + $0x10] sm:$0x1]
    %v164 = vld [vmem:[#allocation7] sm:$0x1]
    %v166 = vlaneseq
    %v167 = vshrl.u32 %v166, 7
    %v168 = vsub.s32 0, %v167
    %v169 = vrot.slane %v164, %v168
    %vm171 = vcmask 138240
    %v173 = vsel %vm171, %v160, 0
    %vm175 = vcmask 1040384
    %v177 = vsel %vm175, %v163, 0
    %179 = vmatprep.subr.mxu0 0.0
    %180 = vmatpush1.msra.mxu0 0.0
    %181 = vmatprep.subr.mxu0 0.0
    %182 = vmatpush1.msra.mxu0 0.0
    %183 = vmatprep.subr.mxu0 0.0
    %184 = vmatpush1.msra.mxu0 0.0
    %185 = vmatprep.subr.mxu0 0.0
    %186 = vmatpush1.msra.mxu0 0.0
    %187 = vmatprep.subr.mxu0 0.0
    %188 = vmatpush1.msra.mxu0 0.0
    %189 = vmatprep.subr.mxu0 0.0
    %190 = vmatpush1.msra.mxu0 0.0
    %191 = vmatprep.subr.mxu0 0.0
    %192 = vmatpush1.msra.mxu0 0.0
    %193 = vmatprep.subr.mxu0 0.0
    %194 = vmatpush1.msra.mxu0 0.0
    %195 = vmatprep.subr.mxu0 0.0
    %196 = vmatpush1.msra.mxu0 0.0
    %197 = vmatprep.subr.mxu0 0.0
    %198 = vmatpush1.msra.mxu0 0.0
    %199 = vmatprep.subr.mxu0 0.0
    %200 = vmatpush1.msra.mxu0 0.0
    %201 = vmatprep.subr.mxu0 0.0
    %202 = vmatpush1.msra.mxu0 0.0
    %203 = vmatprep.subr.mxu0 0.0
    %204 = vmatpush1.msra.mxu0 0.0
    %205 = vmatprep.subr.mxu0 0.0
    %206 = vmatpush1.msra.mxu0 %v177
    %207 = vmatprep.subr.mxu0 0.0
    %208 = vmatpush1.msra.mxu0 %v162
    %209 = vmatprep.subr.mxu0 0.0
    %210 = vmatpush1.msra.mxu0 %v161
    %211 = vmatprep.subr.mxu0 0.0
    %212 = vmatpush2.msra.mxu0 0.0
    %213 = vmatprep.subr.mxu0 0.0
    %214 = vmatpush2.msra.mxu0 0.0
    %215 = vmatprep.subr.mxu0 0.0
    %216 = vmatpush2.msra.mxu0 0.0
    %217 = vmatprep.subr.mxu0 0.0
    %218 = vmatpush2.msra.mxu0 0.0
    %219 = vmatprep.subr.mxu0 0.0
    %220 = vmatpush2.msra.mxu0 0.0
    %221 = vmatprep.subr.mxu0 0.0
    %222 = vmatpush2.msra.mxu0 0.0
    %223 = vmatprep.subr.mxu0 0.0
    %224 = vmatpush2.msra.mxu0 0.0
    %225 = vmatprep.subr.mxu0 0.0
    %226 = vmatpush2.msra.mxu0 0.0
    %227 = vmatprep.subr.mxu0 0.0
    %228 = vmatpush2.msra.mxu0 0.0
    %229 = vmatprep.subr.mxu0 0.0
    %230 = vmatpush2.msra.mxu0 0.0
    %231 = vmatprep.subr.mxu0 0.0
    %232 = vmatpush2.msra.mxu0 0.0
    %233 = vmatprep.subr.mxu0 0.0
    %234 = vmatpush2.msra.mxu0 0.0
    %235 = vmatprep.subr.mxu0 0.0
    %236 = vmatpush2.msra.mxu0 0.0
    %237 = vmatprep.subr.mxu0 0.0
    %238 = vmatpush2.msra.mxu0 0.0
    %239 = vmatprep.subr.mxu0 0.0
    %240 = vmatpush2.msra.mxu0 0.0
    %241 = vmatprep.subr.mxu0 0.0
    %242 = vmatpush2.msra.mxu0 0.0
    %243 = vmatprep.mubr.f32.mxu0 0.0
    %244 = vmatmul.mubr.f32.gmra.mxu0 %v173
    %v245 = vpop.f32.mrf.mxu0
    %v246 = vadd.f32 %v169, %v245
    %v247 = vpop.f32.mrf.mxu0
    %248 = vdwg.mxu0
    %v249 = vmax.f32 %v246, 0.0
    %v250 = vld [vmem:[%s3] sm:$0xff]
    %v251 = vld [vmem:[%s3 + $0x8] sm:$0xff]
    %v252 = vld [vmem:[%s3 + $0x10] sm:$0xff]
    %v253 = vld [vmem:[%s3 + $0x18] sm:$0xff]
    %v254 = vld [vmem:[#allocation8] sm:$0x1]
    %v256 = vlaneseq
    %v257 = vshrl.u32 %v256, 7
    %v258 = vsub.s32 0, %v257
    %v259 = vrot.slane %v254, %v258
    %vm261 = vcmask 261120
    %v263 = vsel %vm261, %v249, 0
    %265 = vmatprep.subr.mxu0 0.0
    %266 = vmatpush1.msra.mxu0 0.0
    %267 = vmatprep.subr.mxu0 0.0
    %268 = vmatpush1.msra.mxu0 0.0
    %269 = vmatprep.subr.mxu0 0.0
    %270 = vmatpush1.msra.mxu0 0.0
    %271 = vmatprep.subr.mxu0 0.0
    %272 = vmatpush1.msra.mxu0 0.0
    %273 = vmatprep.subr.mxu0 0.0
    %274 = vmatpush1.msra.mxu0 0.0
    %275 = vmatprep.subr.mxu0 0.0
    %276 = vmatpush1.msra.mxu0 0.0
    %277 = vmatprep.subr.mxu0 0.0
    %278 = vmatpush1.msra.mxu0 0.0
    %279 = vmatprep.subr.mxu0 0.0
    %280 = vmatpush1.msra.mxu0 0.0
    %281 = vmatprep.subr.mxu0 0.0
    %282 = vmatpush1.msra.mxu0 0.0
    %283 = vmatprep.subr.mxu0 0.0
    %284 = vmatpush1.msra.mxu0 0.0
    %285 = vmatprep.subr.mxu0 0.0
    %286 = vmatpush1.msra.mxu0 0.0
    %287 = vmatprep.subr.mxu0 0.0
    %288 = vmatpush1.msra.mxu0 0.0
    %289 = vmatprep.subr.mxu0 0.0
    %290 = vmatpush1.msra.mxu0 %v253
    %291 = vmatprep.subr.mxu0 0.0
    %292 = vmatpush1.msra.mxu0 %v252
    %293 = vmatprep.subr.mxu0 0.0
    %294 = vmatpush1.msra.mxu0 %v251
    %295 = vmatprep.subr.mxu0 0.0
    %296 = vmatpush1.msra.mxu0 %v250
    %297 = vmatprep.subr.mxu0 0.0
    %298 = vmatpush2.msra.mxu0 0.0
    %299 = vmatprep.subr.mxu0 0.0
    %300 = vmatpush2.msra.mxu0 0.0
    %301 = vmatprep.subr.mxu0 0.0
    %302 = vmatpush2.msra.mxu0 0.0
    %303 = vmatprep.subr.mxu0 0.0
    %304 = vmatpush2.msra.mxu0 0.0
    %305 = vmatprep.subr.mxu0 0.0
    %306 = vmatpush2.msra.mxu0 0.0
    %307 = vmatprep.subr.mxu0 0.0
    %308 = vmatpush2.msra.mxu0 0.0
    %309 = vmatprep.subr.mxu0 0.0
    %310 = vmatpush2.msra.mxu0 0.0
    %311 = vmatprep.subr.mxu0 0.0
    %312 = vmatpush2.msra.mxu0 0.0
    %313 = vmatprep.subr.mxu0 0.0
    %314 = vmatpush2.msra.mxu0 0.0
    %315 = vmatprep.subr.mxu0 0.0
    %316 = vmatpush2.msra.mxu0 0.0
    %317 = vmatprep.subr.mxu0 0.0
    %318 = vmatpush2.msra.mxu0 0.0
    %319 = vmatprep.subr.mxu0 0.0
    %320 = vmatpush2.msra.mxu0 0.0
    %321 = vmatprep.subr.mxu0 0.0
    %322 = vmatpush2.msra.mxu0 0.0
    %323 = vmatprep.subr.mxu0 0.0
    %324 = vmatpush2.msra.mxu0 0.0
    %325 = vmatprep.subr.mxu0 0.0
    %326 = vmatpush2.msra.mxu0 0.0
    %327 = vmatprep.subr.mxu0 0.0
    %328 = vmatpush2.msra.mxu0 0.0
    %329 = vmatprep.mubr.f32.mxu0 0.0
    %330 = vmatmul.mubr.f32.gmra.mxu0 %v263
    %v331 = vpop.f32.mrf.mxu0
    %v332 = vadd.f32 %v259, %v331
    %v333 = vpop.f32.mrf.mxu0
    %334 = vdwg.mxu0
    %v335 = vld [vmem:[#allocation10] sm:$0xff]
    %v336 = vld [vmem:[#allocation10 + $0x8] sm:$0xff]
    %v337 = vld [vmem:[#allocation10 + $0x10] sm:$0xff]
    %v338 = vld [vmem:[#allocation10 + $0x18] sm:$0xff]
    %v339 = vld [vmem:[#allocation11] sm:$0xff]
    %v340 = vld [vmem:[#allocation11 + $0x8] sm:$0xff]
    %v341 = vld [vmem:[#allocation11 + $0x10] sm:$0x1]
    %v343 = vsel %vm175, %v341, 0
    %345 = vmatprep.subr.mxu0 0.0
    %346 = vmatpush1.msra.mxu0 0.0
    %347 = vmatprep.subr.mxu0 0.0
    %348 = vmatpush1.msra.mxu0 0.0
    %349 = vmatprep.subr.mxu0 0.0
    %350 = vmatpush1.msra.mxu0 0.0
    %351 = vmatprep.subr.mxu0 0.0
    %352 = vmatpush1.msra.mxu0 0.0
    %353 = vmatprep.subr.mxu0 0.0
    %354 = vmatpush1.msra.mxu0 0.0
    %355 = vmatprep.subr.mxu0 0.0
    %356 = vmatpush1.msra.mxu0 0.0
    %357 = vmatprep.subr.mxu0 0.0
    %358 = vmatpush1.msra.mxu0 0.0
    %359 = vmatprep.subr.mxu0 0.0
    %360 = vmatpush1.msra.mxu0 0.0
    %361 = vmatprep.subr.mxu0 0.0
    %362 = vmatpush1.msra.mxu0 0.0
    %363 = vmatprep.subr.mxu0 0.0
    %364 = vmatpush1.msra.mxu0 0.0
    %365 = vmatprep.subr.mxu0 0.0
    %366 = vmatpush1.msra.mxu0 0.0
    %367 = vmatprep.subr.mxu0 0.0
    %368 = vmatpush1.msra.mxu0 0.0
    %369 = vmatprep.subr.mxu0 0.0
    %370 = vmatpush1.msra.mxu0 0.0
    %371 = vmatprep.subr.mxu0 0.0
    %372 = vmatpush1.msra.mxu0 %v343
    %373 = vmatprep.subr.mxu0 0.0
    %374 = vmatpush1.msra.mxu0 %v340
    %375 = vmatprep.subr.mxu0 0.0
    %376 = vmatpush1.msra.mxu0 %v339
    %377 = vmatprep.subr.mxu0 0.0
    %378 = vmatpush2.msra.mxu0 0.0
    %379 = vmatprep.subr.mxu0 0.0
    %380 = vmatpush2.msra.mxu0 0.0
    %381 = vmatprep.subr.mxu0 0.0
    %382 = vmatpush2.msra.mxu0 0.0
    %383 = vmatprep.subr.mxu0 0.0
    %384 = vmatpush2.msra.mxu0 0.0
    %385 = vmatprep.subr.mxu0 0.0
    %386 = vmatpush2.msra.mxu0 0.0
    %387 = vmatprep.subr.mxu0 0.0
    %388 = vmatpush2.msra.mxu0 0.0
    %389 = vmatprep.subr.mxu0 0.0
    %390 = vmatpush2.msra.mxu0 0.0
    %391 = vmatprep.subr.mxu0 0.0
    %392 = vmatpush2.msra.mxu0 0.0
    %393 = vmatprep.subr.mxu0 0.0
    %394 = vmatpush2.msra.mxu0 0.0
    %395 = vmatprep.subr.mxu0 0.0
    %396 = vmatpush2.msra.mxu0 0.0
    %397 = vmatprep.subr.mxu0 0.0
    %398 = vmatpush2.msra.mxu0 0.0
    %399 = vmatprep.subr.mxu0 0.0
    %400 = vmatpush2.msra.mxu0 0.0
    %401 = vmatprep.subr.mxu0 0.0
    %402 = vmatpush2.msra.mxu0 0.0
    %403 = vmatprep.subr.mxu0 0.0
    %404 = vmatpush2.msra.mxu0 0.0
    %405 = vmatprep.subr.mxu0 0.0
    %406 = vmatpush2.msra.mxu0 0.0
    %407 = vmatprep.subr.mxu0 0.0
    %408 = vmatpush2.msra.mxu0 0.0
    %409 = vmatprep.mubr.f32.mxu0 0.0
    %410 = vmatmul.mubr.f32.gmra.mxu0 %v173
    %v411 = vpop.f32.mrf.mxu0
    %v412 = vadd.f32 0.0, %v411
    %v413 = vpop.f32.mrf.mxu0
    %414 = vdwg.mxu0
    %v416 = vsel %vm261, %v332, 0
    %418 = vmatprep.subr.mxu0 0.0
    %419 = vmatpush1.msra.mxu0 0.0
    %420 = vmatprep.subr.mxu0 0.0
    %421 = vmatpush1.msra.mxu0 0.0
    %422 = vmatprep.subr.mxu0 0.0
    %423 = vmatpush1.msra.mxu0 0.0
    %424 = vmatprep.subr.mxu0 0.0
    %425 = vmatpush1.msra.mxu0 0.0
    %426 = vmatprep.subr.mxu0 0.0
    %427 = vmatpush1.msra.mxu0 0.0
    %428 = vmatprep.subr.mxu0 0.0
    %429 = vmatpush1.msra.mxu0 0.0
    %430 = vmatprep.subr.mxu0 0.0
    %431 = vmatpush1.msra.mxu0 0.0
    %432 = vmatprep.subr.mxu0 0.0
    %433 = vmatpush1.msra.mxu0 0.0
    %434 = vmatprep.subr.mxu0 0.0
    %435 = vmatpush1.msra.mxu0 0.0
    %436 = vmatprep.subr.mxu0 0.0
    %437 = vmatpush1.msra.mxu0 0.0
    %438 = vmatprep.subr.mxu0 0.0
    %439 = vmatpush1.msra.mxu0 0.0
    %440 = vmatprep.subr.mxu0 0.0
    %441 = vmatpush1.msra.mxu0 0.0
    %442 = vmatprep.subr.mxu0 0.0
    %443 = vmatpush1.msra.mxu0 %v338
    %444 = vmatprep.subr.mxu0 0.0
    %445 = vmatpush1.msra.mxu0 %v337
    %446 = vmatprep.subr.mxu0 0.0
    %447 = vmatpush1.msra.mxu0 %v336
    %448 = vmatprep.subr.mxu0 0.0
    %449 = vmatpush1.msra.mxu0 %v335
    %450 = vmatprep.subr.mxu0 0.0
    %451 = vmatpush2.msra.mxu0 0.0
    %452 = vmatprep.subr.mxu0 0.0
    %453 = vmatpush2.msra.mxu0 0.0
    %454 = vmatprep.subr.mxu0 0.0
    %455 = vmatpush2.msra.mxu0 0.0
    %456 = vmatprep.subr.mxu0 0.0
    %457 = vmatpush2.msra.mxu0 0.0
    %458 = vmatprep.subr.mxu0 0.0
    %459 = vmatpush2.msra.mxu0 0.0
    %460 = vmatprep.subr.mxu0 0.0
    %461 = vmatpush2.msra.mxu0 0.0
    %462 = vmatprep.subr.mxu0 0.0
    %463 = vmatpush2.msra.mxu0 0.0
    %464 = vmatprep.subr.mxu0 0.0
    %465 = vmatpush2.msra.mxu0 0.0
    %466 = vmatprep.subr.mxu0 0.0
    %467 = vmatpush2.msra.mxu0 0.0
    %468 = vmatprep.subr.mxu0 0.0
    %469 = vmatpush2.msra.mxu0 0.0
    %470 = vmatprep.subr.mxu0 0.0
    %471 = vmatpush2.msra.mxu0 0.0
    %472 = vmatprep.subr.mxu0 0.0
    %473 = vmatpush2.msra.mxu0 0.0
    %474 = vmatprep.subr.mxu0 0.0
    %475 = vmatpush2.msra.mxu0 0.0
    %476 = vmatprep.subr.mxu0 0.0
    %477 = vmatpush2.msra.mxu0 0.0
    %478 = vmatprep.subr.mxu0 0.0
    %479 = vmatpush2.msra.mxu0 0.0
    %480 = vmatprep.subr.mxu0 0.0
    %481 = vmatpush2.msra.mxu0 0.0
    %482 = vmatprep.mubr.f32.mxu0 0.0
    %483 = vmatmul.mubr.f32.gmra.mxu0 %v416
    %v484 = vpop.f32.mrf.mxu0
    %v485 = vadd.f32 %v412, %v484
    %v486 = vpop.f32.mrf.mxu0
    %487 = vdwg.mxu0
    %v488 = vld [vmem:[#allocation13] sm:$0x1]
    %v490 = vlaneseq
    %v491 = vshrl.u32 %v490, 7
    %v492 = vsub.s32 0, %v491
    %v493 = vrot.slane %v488, %v492
    %v495 = vadd.f32 %v485, %v493
    %v496 = vmax.f32 %v495, 0.0
    %v497 = vld [vmem:[#allocation14] sm:$0xff]
    %v498 = vld [vmem:[#allocation14 + $0x8] sm:$0xff]
    %v499 = vld [vmem:[#allocation14 + $0x10] sm:$0xff]
    %v500 = vld [vmem:[#allocation14 + $0x18] sm:$0xff]
    %v501 = vld [vmem:[#allocation16] sm:$0x1]
    %v503 = vlaneseq
    %v504 = vshrl.u32 %v503, 7
    %v505 = vsub.s32 0, %v504
    %v506 = vrot.slane %v501, %v505
    %v509 = vsel %vm261, %v496, 0
    %511 = vmatprep.subr.mxu0 0.0
    %512 = vmatpush1.msra.mxu0 0.0
    %513 = vmatprep.subr.mxu0 0.0
    %514 = vmatpush1.msra.mxu0 0.0
    %515 = vmatprep.subr.mxu0 0.0
    %516 = vmatpush1.msra.mxu0 0.0
    %517 = vmatprep.subr.mxu0 0.0
    %518 = vmatpush1.msra.mxu0 0.0
    %519 = vmatprep.subr.mxu0 0.0
    %520 = vmatpush1.msra.mxu0 0.0
    %521 = vmatprep.subr.mxu0 0.0
    %522 = vmatpush1.msra.mxu0 0.0
    %523 = vmatprep.subr.mxu0 0.0
    %524 = vmatpush1.msra.mxu0 0.0
    %525 = vmatprep.subr.mxu0 0.0
    %526 = vmatpush1.msra.mxu0 0.0
    %527 = vmatprep.subr.mxu0 0.0
    %528 = vmatpush1.msra.mxu0 0.0
    %529 = vmatprep.subr.mxu0 0.0
    %530 = vmatpush1.msra.mxu0 0.0
    %531 = vmatprep.subr.mxu0 0.0
    %532 = vmatpush1.msra.mxu0 0.0
    %533 = vmatprep.subr.mxu0 0.0
    %534 = vmatpush1.msra.mxu0 0.0
    %535 = vmatprep.subr.mxu0 0.0
    %536 = vmatpush1.msra.mxu0 %v500
    %537 = vmatprep.subr.mxu0 0.0
    %538 = vmatpush1.msra.mxu0 %v499
    %539 = vmatprep.subr.mxu0 0.0
    %540 = vmatpush1.msra.mxu0 %v498
    %541 = vmatprep.subr.mxu0 0.0
    %542 = vmatpush1.msra.mxu0 %v497
    %543 = vmatprep.subr.mxu0 0.0
    %544 = vmatpush2.msra.mxu0 0.0
    %545 = vmatprep.subr.mxu0 0.0
    %546 = vmatpush2.msra.mxu0 0.0
    %547 = vmatprep.subr.mxu0 0.0
    %548 = vmatpush2.msra.mxu0 0.0
    %549 = vmatprep.subr.mxu0 0.0
    %550 = vmatpush2.msra.mxu0 0.0
    %551 = vmatprep.subr.mxu0 0.0
    %552 = vmatpush2.msra.mxu0 0.0
    %553 = vmatprep.subr.mxu0 0.0
    %554 = vmatpush2.msra.mxu0 0.0
    %555 = vmatprep.subr.mxu0 0.0
    %556 = vmatpush2.msra.mxu0 0.0
    %557 = vmatprep.subr.mxu0 0.0
    %558 = vmatpush2.msra.mxu0 0.0
    %559 = vmatprep.subr.mxu0 0.0
    %560 = vmatpush2.msra.mxu0 0.0
    %561 = vmatprep.subr.mxu0 0.0
    %562 = vmatpush2.msra.mxu0 0.0
    %563 = vmatprep.subr.mxu0 0.0
    %564 = vmatpush2.msra.mxu0 0.0
    %565 = vmatprep.subr.mxu0 0.0
    %566 = vmatpush2.msra.mxu0 0.0
    %567 = vmatprep.subr.mxu0 0.0
    %568 = vmatpush2.msra.mxu0 0.0
    %569 = vmatprep.subr.mxu0 0.0
    %570 = vmatpush2.msra.mxu0 0.0
    %571 = vmatprep.subr.mxu0 0.0
    %572 = vmatpush2.msra.mxu0 0.0
    %573 = vmatprep.subr.mxu0 0.0
    %574 = vmatpush2.msra.mxu0 0.0
    %575 = vmatprep.mubr.f32.mxu0 0.0
    %576 = vmatmul.mubr.f32.gmra.mxu0 %v509
    %v577 = vpop.f32.mrf.mxu0
    %v578 = vadd.f32 %v506, %v577
    %v579 = vpop.f32.mrf.mxu0
    %580 = vdwg.mxu0
    %v581 = vld [vmem:[%s10] sm:$0xff]
    %v582 = vld [vmem:[%s10 + $0x8] sm:$0xff]
    %v583 = vld [vmem:[%s10 + $0x10] sm:$0xff]
    %v584 = vld [vmem:[%s10 + $0x18] sm:$0xff]
    %v585 = vld [vmem:[%s11] sm:$0x1]
    %v587 = vlaneseq
    %v588 = vshrl.u32 %v587, 7
    %v589 = vsub.s32 0, %v588
    %v590 = vrot.slane %v585, %v589
    %592 = vrot.lane.b32.xlu0 %v496, 96
    %v593 = vpop.permute.xlu0 %592
    %v594 = vsel %vm261, %v593, 0
    %596 = vmatprep.subr.mxu0 0.0
    %597 = vmatpush1.msra.mxu0 0.0
    %598 = vmatprep.subr.mxu0 0.0
    %599 = vmatpush1.msra.mxu0 0.0
    %600 = vmatprep.subr.mxu0 0.0
    %601 = vmatpush1.msra.mxu0 0.0
    %602 = vmatprep.subr.mxu0 0.0
    %603 = vmatpush1.msra.mxu0 0.0
    %604 = vmatprep.subr.mxu0 0.0
    %605 = vmatpush1.msra.mxu0 0.0
    %606 = vmatprep.subr.mxu0 0.0
    %607 = vmatpush1.msra.mxu0 0.0
    %608 = vmatprep.subr.mxu0 0.0
    %609 = vmatpush1.msra.mxu0 0.0
    %610 = vmatprep.subr.mxu0 0.0
    %611 = vmatpush1.msra.mxu0 0.0
    %612 = vmatprep.subr.mxu0 0.0
    %613 = vmatpush1.msra.mxu0 0.0
    %614 = vmatprep.subr.mxu0 0.0
    %615 = vmatpush1.msra.mxu0 0.0
    %616 = vmatprep.subr.mxu0 0.0
    %617 = vmatpush1.msra.mxu0 0.0
    %618 = vmatprep.subr.mxu0 0.0
    %619 = vmatpush1.msra.mxu0 0.0
    %620 = vmatprep.subr.mxu0 0.0
    %621 = vmatpush1.msra.mxu0 %v584
    %622 = vmatprep.subr.mxu0 0.0
    %623 = vmatpush1.msra.mxu0 %v583
    %624 = vmatprep.subr.mxu0 0.0
    %625 = vmatpush1.msra.mxu0 %v582
    %626 = vmatprep.subr.mxu0 0.0
    %627 = vmatpush1.msra.mxu0 %v581
    %628 = vmatprep.subr.mxu0 0.0
    %629 = vmatpush2.msra.mxu0 0.0
    %630 = vmatprep.subr.mxu0 0.0
    %631 = vmatpush2.msra.mxu0 0.0
    %632 = vmatprep.subr.mxu0 0.0
    %633 = vmatpush2.msra.mxu0 0.0
    %634 = vmatprep.subr.mxu0 0.0
    %635 = vmatpush2.msra.mxu0 0.0
    %636 = vmatprep.subr.mxu0 0.0
    %637 = vmatpush2.msra.mxu0 0.0
    %638 = vmatprep.subr.mxu0 0.0
    %639 = vmatpush2.msra.mxu0 0.0
    %640 = vmatprep.subr.mxu0 0.0
    %641 = vmatpush2.msra.mxu0 0.0
    %642 = vmatprep.subr.mxu0 0.0
    %643 = vmatpush2.msra.mxu0 0.0
    %644 = vmatprep.subr.mxu0 0.0
    %645 = vmatpush2.msra.mxu0 0.0
    %646 = vmatprep.subr.mxu0 0.0
    %647 = vmatpush2.msra.mxu0 0.0
    %648 = vmatprep.subr.mxu0 0.0
    %649 = vmatpush2.msra.mxu0 0.0
    %650 = vmatprep.subr.mxu0 0.0
    %651 = vmatpush2.msra.mxu0 0.0
    %652 = vmatprep.subr.mxu0 0.0
    %653 = vmatpush2.msra.mxu0 0.0
    %654 = vmatprep.subr.mxu0 0.0
    %655 = vmatpush2.msra.mxu0 0.0
    %656 = vmatprep.subr.mxu0 0.0
    %657 = vmatpush2.msra.mxu0 0.0
    %658 = vmatprep.subr.mxu0 0.0
    %659 = vmatpush2.msra.mxu0 0.0
    %660 = vmatprep.mubr.f32.mxu0 0.0
    %661 = vmatmul.mubr.f32.gmra.mxu0 %v594
    %v662 = vpop.f32.mrf.mxu0
    %v663 = vadd.f32 %v590, %v662
    %v664 = vpop.f32.mrf.mxu0
    %665 = vdwg.mxu0
    %v666 = vmax.f32 %v663, 0.0
    %v667 = vld [vmem:[%s12] sm:$0xff]
    %v668 = vld [vmem:[%s12 + $0x8] sm:$0xff]
    %v669 = vld [vmem:[%s12 + $0x10] sm:$0xff]
    %v670 = vld [vmem:[%s12 + $0x18] sm:$0xff]
    %v671 = vld [vmem:[%s13] sm:$0x1]
    %v673 = vlaneseq
    %v674 = vshrl.u32 %v673, 7
    %v675 = vsub.s32 0, %v674
    %v676 = vrot.slane %v671, %v675
    %v679 = vsel %vm261, %v666, 0
    %681 = vmatprep.subr.mxu0 0.0
    %682 = vmatpush1.msra.mxu0 0.0
    %683 = vmatprep.subr.mxu0 0.0
    %684 = vmatpush1.msra.mxu0 0.0
    %685 = vmatprep.subr.mxu0 0.0
    %686 = vmatpush1.msra.mxu0 0.0
    %687 = vmatprep.subr.mxu0 0.0
    %688 = vmatpush1.msra.mxu0 0.0
    %689 = vmatprep.subr.mxu0 0.0
    %690 = vmatpush1.msra.mxu0 0.0
    %691 = vmatprep.subr.mxu0 0.0
    %692 = vmatpush1.msra.mxu0 0.0
    %693 = vmatprep.subr.mxu0 0.0
    %694 = vmatpush1.msra.mxu0 0.0
    %695 = vmatprep.subr.mxu0 0.0
    %696 = vmatpush1.msra.mxu0 0.0
    %697 = vmatprep.subr.mxu0 0.0
    %698 = vmatpush1.msra.mxu0 0.0
    %699 = vmatprep.subr.mxu0 0.0
    %700 = vmatpush1.msra.mxu0 0.0
    %701 = vmatprep.subr.mxu0 0.0
    %702 = vmatpush1.msra.mxu0 0.0
    %703 = vmatprep.subr.mxu0 0.0
    %704 = vmatpush1.msra.mxu0 0.0
    %705 = vmatprep.subr.mxu0 0.0
    %706 = vmatpush1.msra.mxu0 %v670
    %707 = vmatprep.subr.mxu0 0.0
    %708 = vmatpush1.msra.mxu0 %v669
    %709 = vmatprep.subr.mxu0 0.0
    %710 = vmatpush1.msra.mxu0 %v668
    %711 = vmatprep.subr.mxu0 0.0
    %712 = vmatpush1.msra.mxu0 %v667
    %713 = vmatprep.subr.mxu0 0.0
    %714 = vmatpush2.msra.mxu0 0.0
    %715 = vmatprep.subr.mxu0 0.0
    %716 = vmatpush2.msra.mxu0 0.0
    %717 = vmatprep.subr.mxu0 0.0
    %718 = vmatpush2.msra.mxu0 0.0
    %719 = vmatprep.subr.mxu0 0.0
    %720 = vmatpush2.msra.mxu0 0.0
    %721 = vmatprep.subr.mxu0 0.0
    %722 = vmatpush2.msra.mxu0 0.0
    %723 = vmatprep.subr.mxu0 0.0
    %724 = vmatpush2.msra.mxu0 0.0
    %725 = vmatprep.subr.mxu0 0.0
    %726 = vmatpush2.msra.mxu0 0.0
    %727 = vmatprep.subr.mxu0 0.0
    %728 = vmatpush2.msra.mxu0 0.0
    %729 = vmatprep.subr.mxu0 0.0
    %730 = vmatpush2.msra.mxu0 0.0
    %731 = vmatprep.subr.mxu0 0.0
    %732 = vmatpush2.msra.mxu0 0.0
    %733 = vmatprep.subr.mxu0 0.0
    %734 = vmatpush2.msra.mxu0 0.0
    %735 = vmatprep.subr.mxu0 0.0
    %736 = vmatpush2.msra.mxu0 0.0
    %737 = vmatprep.subr.mxu0 0.0
    %738 = vmatpush2.msra.mxu0 0.0
    %739 = vmatprep.subr.mxu0 0.0
    %740 = vmatpush2.msra.mxu0 0.0
    %741 = vmatprep.subr.mxu0 0.0
    %742 = vmatpush2.msra.mxu0 0.0
    %743 = vmatprep.subr.mxu0 0.0
    %744 = vmatpush2.msra.mxu0 0.0
    %745 = vmatprep.mubr.f32.mxu0 0.0
    %746 = vmatmul.mubr.f32.gmra.mxu0 %v679
    %v747 = vpop.f32.mrf.mxu0
    %v748 = vadd.f32 %v676, %v747
    %v749 = vpop.f32.mrf.mxu0
    %750 = vdwg.mxu0
    %752 = vrot.lane.b32.xlu0 %v578, 16
    %v753 = vpop.permute.xlu0 %752
    %vm755 = vcmask 130048
    %v756 = vsel %vm755, %v748, %v753
    %vm757 = vcmask 392192
    %v758 = vsel %vm757, %v756, 0.0
    %759 = vst [vmem:[#allocation17] sm:$0xff] %v758
    // Predicated region
    $region94: #{tpu_custom_call.1} parent=1 // pred_check
      _
    $region95: #{tpu_custom_call.1} parent=1 // pred_check_branch
      %761 = sbr.rel (0) target = $region97
    $region96: #{tpu_custom_call.1} parent=1 // pred_region
      %s763 = ssub.s32 128, 128
      %764 = vsyncadd [#allocation4], %s763
      %s766 = sshll.u32 [#allocation17], 4
      %s767 = int_to_ptr.vmem [resolvable:$true] %s766
      %769 = dma.vmem_to_hbm [thread:$0]  %s767, 128, %s14, [#allocation4]
    $region97: #{tpu_custom_call.1} parent=1 // pred_fallthru
      _
    // Predicated region
    $region98: #{tpu_custom_call.1} parent=1 // pred_check
      _
    $region99: #{tpu_custom_call.1} parent=1 // pred_check_branch
      %771 = sbr.rel (0) target = $region101
    $region100: #{tpu_custom_call.1} parent=1 // pred_region
      %772 = dma.done [#allocation4], 128
    $region101: #{tpu_custom_call.1} parent=1 // pred_fallthru
      _
    %773 = vsyncpa [#allocation3], 1
    %774 = vsyncpa [#allocation6], 1
    %775 = vsyncpa [#allocation9], 1
    %776 = vsyncpa [#allocation12], 1
    %777 = vsyncpa [#allocation15], 1
    %778 = vsyncpa [#allocation4], 1

</llo_original>
